<compile_context>
chip_gen: v5e
topology: v5e:2x2
jax: 0.10.0
libtpu: 0.0.40
codegen_flags: <defaults>
</compile_context>

<pallas_src>
import functools

import jax
import jax.numpy as jnp
from jax.experimental import pallas as pl
from jax.experimental.pallas import tpu as pltpu

EPS = 1e-5

_MIB = 1024 * 1024
_RESIDENT_WEIGHT_BYTES = 8 * _MIB   # keep weight resident if (D*D_out*itemsize) <= this

# Physical VMEM per TensorCore (trace-time query; safe fallback = v7x's 64 MiB).
try:
    _PHYS_VMEM = int(pltpu.get_tpu_info().vmem_capacity_bytes)
except Exception:  # pragma: no cover - conservative fallback
    _PHYS_VMEM = 64 * _MIB
_VMEM_CAP = (_PHYS_VMEM * 3) // 4   # leave headroom for compiler scratch


def _round_up(x, m):
    return (x + m - 1) // m * m


def _cdiv(a, b):
    return -(-a // b)


def _prenorm_kernel(x_ref, w_ref, b_ref, csum_ref, o_ref, mean_ref, rstd_ref):
    """Fused LayerNorm(last dim) -> Linear kernel.

    Grid: (row_tiles, n_tiles); N axis is innermost and "arbitrary".

    x_ref:    (TR, D)  raw input rows (block constant in j -> DMA'd once per i)
    w_ref:    (D, TN)  gamma-folded weight tile, x.dtype
    b_ref:    (1, TN)  folded bias tile, f32
    csum_ref: (1, TN)  column sums of the folded weight, f32
    o_ref:    (TR, TN) output tile
    mean_ref: (TR, 1)  f32 scratch (per-row mean)
    rstd_ref: (TR, 1)  f32 scratch (per-row 1/sqrt(var + eps))
    """
    # LayerNorm statistics once per row tile; only (TR,1) scalars are kept, so
    # the MXU below never waits on a (TR,D) normalization pass.
    @pl.when(pl.program_id(1) == 0)
    def _():
        x = x_ref[...].astype(jnp.float32)
        mean = jnp.mean(x, axis=-1, keepdims=True)
        xc = x - mean
        var = jnp.mean(xc * xc, axis=-1, keepdims=True)
        mean_ref[...] = mean
        rstd_ref[...] = jax.lax.rsqrt(var + EPS)

    # MXU consumes raw x in its native dtype; normalization is applied on the
    # (TR, TN) output:  rstd*(x@W_f) - (rstd*mean)*colsum(W_f) + b_f.
    acc = jnp.dot(x_ref[...], w_ref[...], preferred_element_type=jnp.float32)
    rstd = rstd_ref[...]
    shift = rstd * mean_ref[...]
    out = (rstd * acc
           - shift * csum_ref[...].astype(jnp.float32)
           + b_ref[...].astype(jnp.float32))
    o_ref[...] = out.astype(o_ref.dtype)


@functools.partial(jax.jit, static_argnames=("tile_rows", "tile_n"))
def prenorm_linear(x, gamma, beta, w, b, *, tile_rows=256, tile_n=512):
    """PreNorm(dim, Linear(dim, dim_out)) forward.

    x: (B, S, D); gamma/beta: (D,); w: (D_in, D_out) (i.e. y @ w); b: (D_out,).
    """
    B, S, D = x.shape
    D_out = w.shape[1]
    rows = B * S
    itemsize = jnp.dtype(x.dtype).itemsize
    sublane = {4: 8, 2: 16, 1: 32}.get(itemsize, 8)
    lane = 128

    # Fold the LayerNorm affine into the linear (done once per call; weights
    # are static in real use):
    #   (xn*g + be) @ w + b == xn @ (g[:,None]*w) + (be@w + b)
    w_f = (gamma[:, None].astype(jnp.float32) * w.astype(jnp.float32)).astype(x.dtype)
    b_f = (beta.astype(jnp.float32) @ w.astype(jnp.float32)
           + b.astype(jnp.float32))
    # Column sums of the weight actually fed to the MXU (for scale-after-matmul).
    csum = jnp.sum(w_f.astype(jnp.float32), axis=0)

    # --- N tiling over D_out -------------------------------------------------
    weight_bytes = D * D_out * itemsize
    resident = weight_bytes <= _RESIDENT_WEIGHT_BYTES
    if resident:
        # Single N tile: weight block index is constant over the whole grid,
        # so Pallas DMAs it exactly once (kernel becomes MXU-bound).
        tn = _round_up(D_out, lane)
    else:
        tn = _round_up(min(tile_n, D_out), lane)
    d_out_p = _round_up(D_out, tn)
    n_n_tiles = d_out_p // tn

    if d_out_p != D_out:
        pad_n = d_out_p - D_out
        w_f = jnp.pad(w_f, ((0, 0), (0, pad_n)))
        b_f = jnp.pad(b_f, ((0, pad_n),))
        csum = jnp.pad(csum, ((0, pad_n),))
    b_f = b_f.reshape(1, d_out_p)
    csum = csum.reshape(1, d_out_p)

    # --- Row tiling -----------------------------------------------------------
    # When the weight must be streamed per row tile, raise TR so each streamed
    # weight byte feeds more MXU work (arithmetic intensity ~ TR).
    eff_tile_rows = tile_rows if resident else max(tile_rows, 512)
    n_row_tiles = max(1, _cdiv(rows, eff_tile_rows))
    # v7x megacore: prefer >= 2 row tiles so the "parallel" axis can use both
    # TensorCores (no-op on v5e/v6e).
    if n_row_tiles == 1 and rows >= 2 * sublane:
        n_row_tiles = 2
    tr = _round_up(_cdiv(rows, n_row_tiles), sublane)
    rows_p = tr * n_row_tiles

    x2 = x.reshape(rows, D)
    if rows_p != rows:
        x2 = jnp.pad(x2, ((0, rows_p - rows), (0, 0)))

    # --- VMEM budget (double-buffered tiles + scratch + headroom) ------------
    footprint = (2 * (tr * D * itemsize)          # x tile
                 + 2 * (D * tn * itemsize)        # weight tile
                 + 2 * (2 * tn * 4)               # b_f + csum tiles (f32)
                 + 2 * (tr * tn * itemsize)       # output tile
                 + 2 * (tr * 4))                  # mean/rstd scratch
    vmem_limit = int(min(_VMEM_CAP, max(32 * _MIB, footprint + 8 * _MIB)))

    cost = pl.CostEstimate(
        flops=2 * rows_p * D * d_out_p,
        transcendentals=rows_p,                   # one rsqrt per row
        bytes_accessed=(rows_p * D * itemsize
                        + D * d_out_p * itemsize
                        + 2 * d_out_p * 4
                        + rows_p * d_out_p * itemsize),
    )

    out = pl.pallas_call(
        _prenorm_kernel,
        out_shape=jax.ShapeDtypeStruct((rows_p, d_out_p), x.dtype),
        grid_spec=pltpu.PrefetchScalarGridSpec(
            num_scalar_prefetch=0,
            grid=(n_row_tiles, n_n_tiles),
            in_specs=[
                pl.BlockSpec((tr, D), lambda i, j: (i, 0)),    # x (const in j)
                pl.BlockSpec((D, tn), lambda i, j: (0, j)),    # folded weight
                pl.BlockSpec((1, tn), lambda i, j: (0, j)),    # folded bias
                pl.BlockSpec((1, tn), lambda i, j: (0, j)),    # colsum(W_f)
            ],
            out_specs=pl.BlockSpec((tr, tn), lambda i, j: (i, j)),
            scratch_shapes=[
                pltpu.VMEM((tr, 1), jnp.float32),              # mean
                pltpu.VMEM((tr, 1), jnp.float32),              # rstd
            ],
        ),
        compiler_params=pltpu.CompilerParams(
            # Row axis "parallel" (megacore sharding); N axis must stay
            # innermost + "arbitrary" because the stats scratch is filled at
            # j == 0 and reused for j > 0.
            dimension_semantics=("parallel", "arbitrary"),
            vmem_limit_bytes=vmem_limit,
        ),
        cost_estimate=cost,
    )(x2, w_f, b_f, csum)

    return out[:rows, :D_out].reshape(B, S, D_out)


def _reference(x, gamma, beta, w, b):
    x32 = x.astype(jnp.float32)
    mean = jnp.mean(x32, axis=-1, keepdims=True)
    var = jnp.mean((x32 - mean) ** 2, axis=-1, keepdims=True)
    xn = (x32 - mean) * jax.lax.rsqrt(var + EPS)
    y = xn * gamma + beta
    return (y @ w.astype(jnp.float32) + b).astype(x.dtype)


if __name__ == "__main__":
    key = jax.random.PRNGKey(0)

    # --- Case 1: lane-dense shapes (D, D_out multiples of 128) ---------------
    B, S, D = 2, 8, 128
    kx, kg, kb, kw, kbias = jax.random.split(key, 5)
    x = jax.random.normal(kx, (B, S, D), dtype=jnp.float32)
    gamma = 1.0 + 0.01 * jax.random.normal(kg, (D,), dtype=jnp.float32)
    beta = 0.01 * jax.random.normal(kb, (D,), dtype=jnp.float32)
    w = jax.random.normal(kw, (D, D), dtype=jnp.float32) * (1.0 / jnp.sqrt(D))
    b = 0.01 * jax.random.normal(kbias, (D,), dtype=jnp.float32)

    out = jax.block_until_ready(prenorm_linear(x, gamma, beta, w, b))
    ref = _reference(x, gamma, beta, w, b)
    assert out.shape == (B, S, D)
    assert jnp.allclose(out, ref, atol=2e-4, rtol=2e-4), "mismatch vs reference (case 1)"

    # --- Case 2: ragged rows + non-128-multiple D_out (exercises padding) ----
    B2, S2, D2, Dout2 = 1, 5, 64, 96
    k2 = jax.random.split(jax.random.PRNGKey(0), 5)
    x2 = jax.random.normal(k2[0], (B2, S2, D2), dtype=jnp.float32)
    g2 = 1.0 + 0.01 * jax.random.normal(k2[1], (D2,), dtype=jnp.float32)
    be2 = 0.01 * jax.random.normal(k2[2], (D2,), dtype=jnp.float32)
    w2 = jax.random.normal(k2[3], (D2, Dout2), dtype=jnp.float32) * (1.0 / jnp.sqrt(D2))
    b2 = 0.01 * jax.random.normal(k2[4], (Dout2,), dtype=jnp.float32)

    out2 = jax.block_until_ready(prenorm_linear(x2, g2, be2, w2, b2))
    ref2 = _reference(x2, g2, be2, w2, b2)
    assert out2.shape == (B2, S2, Dout2)
    assert jnp.allclose(out2, ref2, atol=2e-4, rtol=2e-4), "mismatch vs reference (case 2)"

    print("KERNEL_OK")
</pallas_src>

<mosaic_0001>
module attributes {stable_mosaic.version = 11 : i64} {
  func.func @_prenorm_kernel(%arg0: i32, %arg1: i32, %arg2: memref<8x128xf32, #tpu.memory_space<vmem>>, %arg3: memref<128x128xf32, #tpu.memory_space<vmem>>, %arg4: memref<1x128xf32, #tpu.memory_space<vmem>>, %arg5: memref<1x128xf32, #tpu.memory_space<vmem>>, %arg6: memref<8x128xf32, #tpu.memory_space<vmem>>, %arg7: memref<8x1xf32, #tpu.memory_space<vmem>>, %arg8: memref<8x1xf32, #tpu.memory_space<vmem>>) attributes {dimension_semantics = [#tpu.dimension_semantics<parallel>, #tpu.dimension_semantics<arbitrary>], iteration_bounds = array<i64: 2, 1>, scalar_prefetch = 0 : i64, scratch_operands = 2 : i64, tpu.core_type = #tpu.core_type<tc>, window_params = [{transform_indices = @transform_0, window_bounds = array<i64: 8, 128>}, {transform_indices = @transform_1, window_bounds = array<i64: 128, 128>}, {transform_indices = @transform_2, window_bounds = array<i64: 1, 128>}, {transform_indices = @transform_3, window_bounds = array<i64: 1, 128>}, {transform_indices = @transform_4, window_bounds = array<i64: 8, 128>}]} {
    %c0_i32 = arith.constant 0 : i32
    %0 = arith.cmpi eq, %arg1, %c0_i32 : i32
    %1 = arith.extui %0 : i1 to i32
    %c0_i32_0 = arith.constant 0 : i32
    %2 = arith.cmpi ne, %1, %c0_i32_0 : i32
    scf.if %2 {
      %c0_14 = arith.constant 0 : index
      %c0_15 = arith.constant 0 : index
      %20 = vector.load %arg2[%c0_14, %c0_15] : memref<8x128xf32, #tpu.memory_space<vmem>>, vector<8x128xf32>
      %cst_16 = arith.constant dense<0.000000e+00> : vector<8xf32>
      %21 = vector.multi_reduction <add>, %20, %cst_16 [1] : vector<8x128xf32> to vector<8xf32>
      %22 = vector.shape_cast %21 : vector<8xf32> to vector<8x1xf32>
      %cst_17 = arith.constant 1.280000e+02 : f32
      %23 = vector.broadcast %cst_17 : f32 to vector<8x1xf32>
      %24 = arith.divf %22, %23 : vector<8x1xf32>
      %25 = vector.broadcast %24 : vector<8x1xf32> to vector<8x128xf32>
      %26 = arith.subf %20, %25 : vector<8x128xf32>
      %27 = arith.mulf %26, %26 : vector<8x128xf32>
      %cst_18 = arith.constant dense<0.000000e+00> : vector<8xf32>
      %28 = vector.multi_reduction <add>, %27, %cst_18 [1] : vector<8x128xf32> to vector<8xf32>
      %29 = vector.shape_cast %28 : vector<8xf32> to vector<8x1xf32>
      %cst_19 = arith.constant 1.280000e+02 : f32
      %30 = vector.broadcast %cst_19 : f32 to vector<8x1xf32>
      %31 = arith.divf %29, %30 : vector<8x1xf32>
      %c0_20 = arith.constant 0 : index
      %c0_21 = arith.constant 0 : index
      %32 = vector.load %arg7[%c0_20, %c0_21] : memref<8x1xf32, #tpu.memory_space<vmem>>, vector<8x1xf32>
      tpu.vector_store %arg7[%c0_20, %c0_21], %24 {strides = array<i32>} : memref<8x1xf32, #tpu.memory_space<vmem>>, vector<8x1xf32>,
      %cst_22 = arith.constant 9.99999974E-6 : f32
      %33 = vector.broadcast %cst_22 : f32 to vector<8x1xf32>
      %34 = arith.addf %31, %33 : vector<8x1xf32>
      %35 = math.rsqrt %34 : vector<8x1xf32>
      %c0_23 = arith.constant 0 : index
      %c0_24 = arith.constant 0 : index
      %36 = vector.load %arg8[%c0_23, %c0_24] : memref<8x1xf32, #tpu.memory_space<vmem>>, vector<8x1xf32>
      tpu.vector_store %arg8[%c0_23, %c0_24], %35 {strides = array<i32>} : memref<8x1xf32, #tpu.memory_space<vmem>>, vector<8x1xf32>,
    } else {
    }
    %c0 = arith.constant 0 : index
    %c0_1 = arith.constant 0 : index
    %3 = vector.load %arg2[%c0, %c0_1] : memref<8x128xf32, #tpu.memory_space<vmem>>, vector<8x128xf32>
    %c0_2 = arith.constant 0 : index
    %c0_3 = arith.constant 0 : index
    %4 = vector.load %arg3[%c0_2, %c0_3] : memref<128x128xf32, #tpu.memory_space<vmem>>, vector<128x128xf32>
    %cst = arith.constant dense<0.000000e+00> : vector<8x128xf32>
    %5 = tpu.matmul %3, %4, %cst {dimension_numbers = #tpu.dot_dimension_numbers<[1], [0], [0], [1], [0, 0, 1, 1], [], []>} : vector<8x128xf32>, vector<128x128xf32>, vector<8x128xf32> -> vector<8x128xf32>
    %c0_4 = arith.constant 0 : index
    %c0_5 = arith.constant 0 : index
    %6 = vector.load %arg8[%c0_4, %c0_5] : memref<8x1xf32, #tpu.memory_space<vmem>>, vector<8x1xf32>
    %c0_6 = arith.constant 0 : index
    %c0_7 = arith.constant 0 : index
    %7 = vector.load %arg7[%c0_6, %c0_7] : memref<8x1xf32, #tpu.memory_space<vmem>>, vector<8x1xf32>
    %8 = arith.mulf %6, %7 : vector<8x1xf32>
    %9 = vector.broadcast %6 : vector<8x1xf32> to vector<8x128xf32>
    %10 = arith.mulf %9, %5 : vector<8x128xf32>
    %c0_8 = arith.constant 0 : index
    %c0_9 = arith.constant 0 : index
    %11 = vector.load %arg5[%c0_8, %c0_9] : memref<1x128xf32, #tpu.memory_space<vmem>>, vector<1x128xf32>
    %12 = vector.broadcast %8 : vector<8x1xf32> to vector<8x128xf32>
    %13 = vector.broadcast %11 : vector<1x128xf32> to vector<8x128xf32>
    %14 = arith.mulf %12, %13 : vector<8x128xf32>
    %15 = arith.subf %10, %14 : vector<8x128xf32>
    %c0_10 = arith.constant 0 : index
    %c0_11 = arith.constant 0 : index
    %16 = vector.load %arg4[%c0_10, %c0_11] : memref<1x128xf32, #tpu.memory_space<vmem>>, vector<1x128xf32>
    %17 = vector.broadcast %16 : vector<1x128xf32> to vector<8x128xf32>
    %18 = arith.addf %15, %17 : vector<8x128xf32>
    %c0_12 = arith.constant 0 : index
    %c0_13 = arith.constant 0 : index
    %19 = vector.load %arg6[%c0_12, %c0_13] : memref<8x128xf32, #tpu.memory_space<vmem>>, vector<8x128xf32>
    tpu.vector_store %arg6[%c0_12, %c0_13], %18 {strides = array<i32>} : memref<8x128xf32, #tpu.memory_space<vmem>>, vector<8x128xf32>,
    return
  }
  func.func @transform_0(%arg0: i32, %arg1: i32) -> (i32, i32) {
    %c0_i32 = arith.constant 0 : i32
    %c0_i32_0 = arith.constant 0 : i32
    return %arg0, %c0_i32 : i32, i32
  }
  func.func @transform_1(%arg0: i32, %arg1: i32) -> (i32, i32) {
    %c0_i32 = arith.constant 0 : i32
    %c0_i32_0 = arith.constant 0 : i32
    return %c0_i32, %arg1 : i32, i32
  }
  func.func @transform_2(%arg0: i32, %arg1: i32) -> (i32, i32) {
    %c0_i32 = arith.constant 0 : i32
    %c0_i32_0 = arith.constant 0 : i32
    return %c0_i32, %arg1 : i32, i32
  }
  func.func @transform_3(%arg0: i32, %arg1: i32) -> (i32, i32) {
    %c0_i32 = arith.constant 0 : i32
    %c0_i32_0 = arith.constant 0 : i32
    return %c0_i32, %arg1 : i32, i32
  }
  func.func @transform_4(%arg0: i32, %arg1: i32) -> (i32, i32) {
    %c0_i32 = arith.constant 0 : i32
    return %arg0, %arg1 : i32, i32
  }
}

</mosaic_0001>

<llo_original>
// kernel: prenorm_linear.1
$region0: #{prenorm_linear.1}
  #allocation0 [shape = 'u32[]', space=smem, size = 0x4, offset = 0x4, fixed_abs, tag = 'smem constant byte address 0x4 - core index']
  #allocation1 [shape = 'u32[72,128]{1,0:T(1,128)}', space=vmem, size = 0x9000, scoped, tag = 'internal scratch']
  #allocation2 [shape = 'f32[8,1]{1,0:T(8,128)}', space=vmem, size = 0x1000, scoped, tag = 'scratch operand']
  #allocation3 [shape = 'f32[8,1]{1,0:T(8,128)}', space=vmem, size = 0x1000, scoped, tag = 'scratch operand']
  %s0 = inlined_call_operand.vmem [shape: f32[16,128], index: 0, kind: input, shape index: {}]
  %s1 = inlined_call_operand.vmem [shape: f32[128,128], index: 1, kind: input, shape index: {}]
  %s2 = inlined_call_operand.vmem [shape: f32[1,128], index: 2, kind: input, shape index: {}]
  %s3 = inlined_call_operand.vmem [shape: f32[1,128], index: 3, kind: input, shape index: {}]
  %s4 = inlined_call_operand.hbm [shape: f32[16,128], index: 4, kind: output, shape index: {}]
  %s5 = sld [smem:[#allocation0]]
  $region53: #{prenorm_linear.1} parent=0
    _
  %s7 = ssub.s32 1, %s5
  %s8 = scalar_select 0, %s7, %s5
  $region1: #{prenorm_linear.1} parent=0
    #allocation4 [shape = 'u8[8192]{0}', space=vmem, size = 0x2000, scoped, tag = 'output window, operand 0']
    #allocation5 [shape = 's32[2]{0}', space=sflag, size = 0x8, scoped, tag = 'scoped memory for prenorm_linear.1']
    %9 = vsyncpa [#allocation5], 0
    %s10 = scalar_lea.sflag [#allocation5], 1
    %11 = vsyncpa %s10, 0
    loop: start=0, step=1, limit=4
    $region2: #{prenorm_linear.1} parent=1 // loop_pre_header
      _
    $region3: #{prenorm_linear.1} parent=1 // loop_header
      %s13 = sphi 0, %s17
      %p14 = scmp.ge.s32.totalorder %s13, 4
      %s20 = sphi 0, %s32
      %s21 = sphi 0, %s28
      %s22 = sphi 0, %s20
      %s23 = sphi 0, %s21
      %s24 = sphi 0, %s22
      %s25 = sphi 0, %s23
      %s35 = sphi 0, %s37
      %s38 = sphi 0, %s35
      %s39 = sphi 0, %s38
      %s55 = sphi 0, %s39
      %s61 = sphi 0, %s63
      %s64 = sphi 0, %s61
      %s65 = sphi 0, %s64
      %s81 = sphi 0, %s65
      %s87 = sphi 0, %s89
      %s90 = sphi 0, %s87
      %s91 = sphi 0, %s90
      %s107 = sphi 0, %s91
      %s113 = sphi 0, %s115
      %s116 = sphi 0, %s113
      %s117 = sphi 0, %s116
      %s133 = sphi 0, %s117
      %s141 = sphi 0, %s143
      %s144 = sphi 0, %s141
      %s145 = sphi 0, %s144
      %s161 = sphi 0, %s145
    $region4: #{prenorm_linear.1} parent=1 // loop_header_branch
      %16 = sbr.rel (%p14) target = $region8
    $region5: #{prenorm_linear.1} parent=1 // loop_body
      %s18 = ssub.s32 %s13, 1
      %s19 = ssub.s32 %s13, 2
      %s26 = sadd.s32 1, %s21
      %p27 = scmp.ge.s32.totalorder %s26, 1
      %s28 = scalar_select %p27, 0, %s26
      %s29 = sadd.s32 1, %s20
      %s30 = scalar_select %p27, %s29, %s20
      %p31 = scmp.ge.s32.totalorder %s30, 2
      %s32 = scalar_select %p31, 0, %s30
      %s33 = ssub.s32 %s20, %s32
      %p34 = scmp.eq.s32.totalorder %s33, 0
      %s36 = sadd.s32 %s35, 1
      %s37 = scalar_select %p34, %s35, %s36
      %p40 = pneg %p34
      %p41 = scmp.eq.s32.totalorder %s13, 1
      %p42 = por %p40, %p41
      %p43 = scmp.ne.s32.totalorder %s35, %s38
      %p44 = scmp.eq.s32.totalorder %s13, 0
      %p45 = por %p43, %p44
      %p46 = scmp.ne.s32.totalorder %s35, %s38
      %p47 = scmp.eq.s32.totalorder %s18, 1
      %p48 = por %p46, %p47
      %p49 = scmp.ne.s32.totalorder %s38, %s39
      %p50 = scmp.eq.s32.totalorder %s18, 0
      %p51 = por %p49, %p50
      %p52 = scmp.ne.s32.totalorder %s38, %s39
      %p53 = scmp.eq.s32.totalorder %s19, 1
      %p54 = por %p52, %p53
      %p56 = scmp.ne.s32.totalorder %s39, %s55
      %p57 = scmp.eq.s32.totalorder %s19, 0
      %p58 = por %p56, %p57
      %s59 = ssub.s32 %s21, %s28
      %p60 = scmp.eq.s32.totalorder %s59, 0
      %s62 = sadd.s32 %s61, 1
      %s63 = scalar_select %p60, %s61, %s62
      %p66 = pneg %p60
      %p67 = scmp.eq.s32.totalorder %s13, 1
      %p68 = por %p66, %p67
      %p69 = scmp.ne.s32.totalorder %s61, %s64
      %p70 = scmp.eq.s32.totalorder %s13, 0
      %p71 = por %p69, %p70
      %p72 = scmp.ne.s32.totalorder %s61, %s64
      %p73 = scmp.eq.s32.totalorder %s18, 1
      %p74 = por %p72, %p73
      %p75 = scmp.ne.s32.totalorder %s64, %s65
      %p76 = scmp.eq.s32.totalorder %s18, 0
      %p77 = por %p75, %p76
      %p78 = scmp.ne.s32.totalorder %s64, %s65
      %p79 = scmp.eq.s32.totalorder %s19, 1
      %p80 = por %p78, %p79
      %p82 = scmp.ne.s32.totalorder %s65, %s81
      %p83 = scmp.eq.s32.totalorder %s19, 0
      %p84 = por %p82, %p83
      %s85 = ssub.s32 %s21, %s28
      %p86 = scmp.eq.s32.totalorder %s85, 0
      %s88 = sadd.s32 %s87, 1
      %s89 = scalar_select %p86, %s87, %s88
      %p92 = pneg %p86
      %p93 = scmp.eq.s32.totalorder %s13, 1
      %p94 = por %p92, %p93
      %p95 = scmp.ne.s32.totalorder %s87, %s90
      %p96 = scmp.eq.s32.totalorder %s13, 0
      %p97 = por %p95, %p96
      %p98 = scmp.ne.s32.totalorder %s87, %s90
      %p99 = scmp.eq.s32.totalorder %s18, 1
      %p100 = por %p98, %p99
      %p101 = scmp.ne.s32.totalorder %s90, %s91
      %p102 = scmp.eq.s32.totalorder %s18, 0
      %p103 = por %p101, %p102
      %p104 = scmp.ne.s32.totalorder %s90, %s91
      %p105 = scmp.eq.s32.totalorder %s19, 1
      %p106 = por %p104, %p105
      %p108 = scmp.ne.s32.totalorder %s91, %s107
      %p109 = scmp.eq.s32.totalorder %s19, 0
      %p110 = por %p108, %p109
      %s111 = ssub.s32 %s21, %s28
      %p112 = scmp.eq.s32.totalorder %s111, 0
      %s114 = sadd.s32 %s113, 1
      %s115 = scalar_select %p112, %s113, %s114
      %p118 = pneg %p112
      %p119 = scmp.eq.s32.totalorder %s13, 1
      %p120 = por %p118, %p119
      %p121 = scmp.ne.s32.totalorder %s113, %s116
      %p122 = scmp.eq.s32.totalorder %s13, 0
      %p123 = por %p121, %p122
      %p124 = scmp.ne.s32.totalorder %s113, %s116
      %p125 = scmp.eq.s32.totalorder %s18, 1
      %p126 = por %p124, %p125
      %p127 = scmp.ne.s32.totalorder %s116, %s117
      %p128 = scmp.eq.s32.totalorder %s18, 0
      %p129 = por %p127, %p128
      %p130 = scmp.ne.s32.totalorder %s116, %s117
      %p131 = scmp.eq.s32.totalorder %s19, 1
      %p132 = por %p130, %p131
      %p134 = scmp.ne.s32.totalorder %s117, %s133
      %p135 = scmp.eq.s32.totalorder %s19, 0
      %p136 = por %p134, %p135
      %s137 = ssub.s32 %s20, %s32
      %s138 = ssub.s32 %s21, %s28
      %s139 = sor.u32 %s137, %s138
      %p140 = scmp.eq.s32.totalorder %s139, 0
      %s142 = sadd.s32 %s141, 1
      %s143 = scalar_select %p140, %s141, %s142
      %p146 = pneg %p140
      %p147 = scmp.eq.s32.totalorder %s13, 1
      %p148 = por %p146, %p147
      %p149 = scmp.ne.s32.totalorder %s141, %s144
      %p150 = scmp.eq.s32.totalorder %s13, 0
      %p151 = por %p149, %p150
      %p152 = scmp.ne.s32.totalorder %s141, %s144
      %p153 = scmp.eq.s32.totalorder %s18, 1
      %p154 = por %p152, %p153
      %p155 = scmp.ne.s32.totalorder %s144, %s145
      %p156 = scmp.eq.s32.totalorder %s18, 0
      %p157 = por %p155, %p156
      %p158 = scmp.ne.s32.totalorder %s144, %s145
      %p159 = scmp.eq.s32.totalorder %s19, 1
      %p160 = por %p158, %p159
      %p162 = scmp.ne.s32.totalorder %s145, %s161
      %p163 = scmp.eq.s32.totalorder %s19, 0
      %p164 = por %p162, %p163
      %p165 = scmp.le.s32.totalorder 1, %s13
      %p166 = scmp.lt.s32.totalorder %s13, 3
      %p167 = pnand %p165, %p166
      %p168 = pneg %p167
      // Predicated region
      $region9: #{prenorm_linear.1} parent=5 // pred_check
        _
      $region10: #{prenorm_linear.1} parent=5 // pred_check_branch
        %170 = sbr.rel (%p167) target = $region12
      $region11: #{prenorm_linear.1} parent=5 // pred_region
        %s171 = ssub.s32 %s13, 1
        // Predicated region
        $region13: #{prenorm_linear.1} parent=11 // pred_check
          %p172 = pneg %p77
        $region14: #{prenorm_linear.1} parent=11 // pred_check_branch
          %174 = sbr.rel (%p172) target = $region16
        $region15: #{prenorm_linear.1} parent=11 // pred_region
          %p175 = scmp.lt.s32.totalorder %s23, 0
          %s176 = scalar_select %p175, %s23, 0
          %s177 = smul.addr %s176, 8
          %s178 = scalar_lea.vmem %s1, %s177
        $region16: #{prenorm_linear.1} parent=11 // pred_fallthru
          _
        // Predicated region
        $region17: #{prenorm_linear.1} parent=11 // pred_check
          %p179 = pneg %p103
        $region18: #{prenorm_linear.1} parent=11 // pred_check_branch
          %181 = sbr.rel (%p179) target = $region20
        $region19: #{prenorm_linear.1} parent=11 // pred_region
          %p182 = scmp.lt.s32.totalorder %s23, 0
          %s183 = scalar_select %p182, %s23, 0
          %s184 = scalar_lea.vmem %s2, %s183
        $region20: #{prenorm_linear.1} parent=11 // pred_fallthru
          _
        // Predicated region
        $region21: #{prenorm_linear.1} parent=11 // pred_check
          %p185 = pneg %p129
        $region22: #{prenorm_linear.1} parent=11 // pred_check_branch
          %187 = sbr.rel (%p185) target = $region24
        $region23: #{prenorm_linear.1} parent=11 // pred_region
          %p188 = scmp.lt.s32.totalorder %s23, 0
          %s189 = scalar_select %p188, %s23, 0
          %s190 = scalar_lea.vmem %s3, %s189
        $region24: #{prenorm_linear.1} parent=11 // pred_fallthru
          _
      $region12: #{prenorm_linear.1} parent=5 // pred_fallthru
        _
      %p191 = scmp.lt.s32.totalorder %s13, 2
      // Predicated region
      $region25: #{prenorm_linear.1} parent=5 // pred_check
        %p192 = pneg %p191
      $region26: #{prenorm_linear.1} parent=5 // pred_check_branch
        %194 = sbr.rel (%p192) target = $region28
      $region27: #{prenorm_linear.1} parent=5 // pred_region
        // Predicated region
        $region29: #{prenorm_linear.1} parent=27 // pred_check
          %p195 = pneg %p45
        $region30: #{prenorm_linear.1} parent=27 // pred_check_branch
          %197 = sbr.rel (%p195) target = $region32
        $region31: #{prenorm_linear.1} parent=27 // pred_region
          %p198 = scmp.lt.s32.totalorder %s20, 1
          %s199 = scalar_select %p198, %s20, 1
          %s200 = smul.addr %s199, 8
          %s201 = scalar_lea.vmem %s0, %s200
        $region32: #{prenorm_linear.1} parent=27 // pred_fallthru
          _
      $region28: #{prenorm_linear.1} parent=5 // pred_fallthru
        _
      %p202 = scmp.le.s32.totalorder 1, %s13
      %p203 = scmp.lt.s32.totalorder %s13, 3
      %p204 = pnand %p202, %p203
      %p205 = pneg %p204
      // Predicated region
      $region33: #{prenorm_linear.1} parent=5 // pred_check
        _
      $region34: #{prenorm_linear.1} parent=5 // pred_check_branch
        %207 = sbr.rel (%p204) target = $region36
      $region35: #{prenorm_linear.1} parent=5 // pred_region
        %s208 = ssub.s32 %s13, 1
        %p209 = scmp.lt.s32.totalorder %s22, 1
        %s210 = scalar_select %p209, %s22, 1
        %s211 = smul.addr %s210, 8
        %s212 = scalar_lea.vmem %s0, %s211
        %p213 = pneg %p51
        %p214 = pneg %p48
        %p215 = scmp.lt.s32.totalorder %s23, 0
        %s216 = scalar_select %p215, %s23, 0
        %s217 = smul.addr %s216, 8
        %s218 = scalar_lea.vmem %s1, %s217
        %p219 = pneg %p77
        %p220 = pneg %p74
        %p221 = scmp.lt.s32.totalorder %s23, 0
        %s222 = scalar_select %p221, %s23, 0
        %s223 = scalar_lea.vmem %s2, %s222
        %p224 = pneg %p103
        %p225 = pneg %p100
        %p226 = scmp.lt.s32.totalorder %s23, 0
        %s227 = scalar_select %p226, %s23, 0
        %s228 = scalar_lea.vmem %s3, %s227
        %p229 = pneg %p129
        %p230 = pneg %p126
        %p231 = pneg %p157
        %p232 = pneg %p154
        %s233 = sand.u32 %s144, 1
        %s234 = scalar_lea.sflag [#allocation5], %s233
        %s235 = sand.u32 %s144, 1
        %s236 = smul.addr %s235, 8
        %s237 = scalar_lea.vmem [#allocation4], %s236
        %p238 = scmp.lt.s32.totalorder %s22, 1
        %s239 = scalar_select %p238, %s22, 1
        %s240 = smul.addr %s239, 8
        %s241 = scalar_lea.vmem %s0, %s240
        %p242 = scmp.lt.s32.totalorder %s23, 0
        %s243 = scalar_select %p242, %s23, 0
        %s244 = smul.addr %s243, 8
        %s245 = scalar_lea.vmem %s1, %s244
        %p246 = scmp.lt.s32.totalorder %s23, 0
        %s247 = scalar_select %p246, %s23, 0
        %s248 = scalar_lea.vmem %s2, %s247
        %p249 = scmp.lt.s32.totalorder %s23, 0
        %s250 = scalar_select %p249, %s23, 0
        %s251 = scalar_lea.vmem %s3, %s250
        %p252 = scmp.eq.s32.totalorder %s23, 0
        // Predicated region
        $region37: #{prenorm_linear.1} parent=35 // pred_check
          %p253 = pneg %p252
        $region38: #{prenorm_linear.1} parent=35 // pred_check_branch
          %255 = sbr.rel (%p253) target = $region40
        $region39: #{prenorm_linear.1} parent=35 // pred_region
          %v256 = vld [vmem:[%s241] sm:$0xff]
          %257 = vadd.xlane.f32.xlu0 %v256
          %v258 = vpop.xlane.xlu0 %257
          %v259 = vrcp.pop 128.0
          %v260 = vmul.f32 128.0, %v259
          %v261 = vsub.f32 1.0, %v260
          %v262 = vmul.f32 %v259, %v261
          %v263 = vadd.f32 %v259, %v262
          %vm264 = vweird.f32 %v259
          %v265 = vsel %vm264, %v259, %v263
          %v266 = vmul.f32 %v258, %v265
          %v267 = vsub.f32 %v256, %v266
          %v268 = vmul.f32 %v267, %v267
          %269 = vadd.xlane.f32.xlu0 %v268
          %v270 = vpop.xlane.xlu0 %269
          %v271 = vmul.f32 %v270, %v265
          %vm272 = vcmask 7168
          %273 = vst.msk [vmem:[#allocation2] sm:$0xff] %vm272, %v266
          %v274 = vadd.f32 %v271, 1e-05
          %v275 = vrsqrt.pop %v274
          %v276 = vmul.f32 %v275, %v274
          %v277 = vmul.f32 %v276, %v275
          %v278 = vmul.f32 0.5, %v277
          %v279 = vsub.f32 1.5, %v278
          %v280 = vmul.f32 %v275, %v279
          %vm281 = vweird.f32 %v274
          %vm282 = vweird.f32 %v275
          %vm283 = vmor %vm281, %vm282
          %v284 = vsel %vm283, %v275, %v280
          %285 = vst.msk [vmem:[#allocation3] sm:$0xff] %vm272, %v284
        $region40: #{prenorm_linear.1} parent=35 // pred_fallthru
          _
        %v286 = vld [vmem:[%s241] sm:$0xff]
        %v287 = vld [vmem:[%s245] sm:$0xff]
        %v288 = vld [vmem:[%s245 + $0x8] sm:$0xff]
        %v289 = vld [vmem:[%s245 + $0x10] sm:$0xff]
        %v290 = vld [vmem:[%s245 + $0x18] sm:$0xff]
        %v291 = vld [vmem:[%s245 + $0x20] sm:$0xff]
        %v292 = vld [vmem:[%s245 + $0x28] sm:$0xff]
        %v293 = vld [vmem:[%s245 + $0x30] sm:$0xff]
        %v294 = vld [vmem:[%s245 + $0x38] sm:$0xff]
        %v295 = vld [vmem:[%s245 + $0x40] sm:$0xff]
        %v296 = vld [vmem:[%s245 + $0x48] sm:$0xff]
        %v297 = vld [vmem:[%s245 + $0x50] sm:$0xff]
        %v298 = vld [vmem:[%s245 + $0x58] sm:$0xff]
        %v299 = vld [vmem:[%s245 + $0x60] sm:$0xff]
        %v300 = vld [vmem:[%s245 + $0x68] sm:$0xff]
        %v301 = vld [vmem:[%s245 + $0x70] sm:$0xff]
        %v302 = vld [vmem:[%s245 + $0x78] sm:$0xff]
        %303 = vmatpush.msra.mxu0 %v302
        %304 = vmatpush.msra.mxu0 %v301
        %305 = vmatpush.msra.mxu0 %v300
        %306 = vmatpush.msra.mxu0 %v299
        %307 = vmatpush.msra.mxu0 %v298
        %308 = vmatpush.msra.mxu0 %v297
        %309 = vmatpush.msra.mxu0 %v296
        %310 = vmatpush.msra.mxu0 %v295
        %311 = vmatpush.msra.mxu0 %v294
        %312 = vmatpush.msra.mxu0 %v293
        %313 = vmatpush.msra.mxu0 %v292
        %314 = vmatpush.msra.mxu0 %v291
        %315 = vmatpush.msra.mxu0 %v290
        %316 = vmatpush.msra.mxu0 %v289
        %317 = vmatpush.msra.mxu0 %v288
        %318 = vmatpush.msra.mxu0 %v287
        %319 = vmatmul.f32.gmra.mxu0 %v286
        %v320 = vpop.f32.mrf.mxu0
        %v321 = vadd.f32 0.0, %v320
        %322 = vdwg.mxu0
        %v323 = vld [vmem:[#allocation3] sm:$0xff]
        %v324 = vld [vmem:[#allocation2] sm:$0xff]
        %v325 = vmul.f32 %v323, %v324
        %327 = vset.pattern.permute.xlu0 0
        %328 = vperm.xlu0 %327, %v323
        %v329 = vpop.permute.xlu0 %328
        %v331 = vmul.f32 %v329, %v321
        %v332 = vld [vmem:[%s251] sm:$0x1]
        %334 = vset.pattern.permute.xlu0 0
        %335 = vperm.xlu0 %334, %v325
        %v336 = vpop.permute.xlu0 %335
        %v339 = vperm.slane %v332, 0
        %v341 = vmul.f32 %v336, %v339
        %v342 = vsub.f32 %v331, %v341
        %v343 = vld [vmem:[%s248] sm:$0x1]
        %v345 = vperm.slane %v343, 0
        %v347 = vadd.f32 %v342, %v345
        %348 = vst [vmem:[%s237] sm:$0xff] %v347
        %s349 = sand.u32 %s144, 1
        %s350 = scalar_lea.sflag [#allocation5], %s349
        %s351 = sand.u32 %s144, 1
        %s352 = smul.addr %s351, 8
        %s353 = scalar_lea.vmem [#allocation4], %s352
        // Predicated region
        $region41: #{prenorm_linear.1} parent=35 // pred_check
          %p354 = pneg %p154
        $region42: #{prenorm_linear.1} parent=35 // pred_check_branch
          %356 = sbr.rel (%p354) target = $region44
        $region43: #{prenorm_linear.1} parent=35 // pred_region
          %358 = vsyncadd %s350, 0
          %s359 = sadd.s32 %s23, %s22
          %s360 = smul.addr %s359, 8
          %s361 = scalar_lea.hbm %s4, %s360
          %s363 = sshll.u32 %s353, 4
          %s364 = int_to_ptr.vmem [resolvable:$true] %s363
          %s365 = sshll.u32 %s361, 4
          %s366 = int_to_ptr.hbm [resolvable:$true] %s365
          %368 = dma.vmem_to_hbm [thread:$0]  %s364, 128, %s366, %s350
        $region44: #{prenorm_linear.1} parent=35 // pred_fallthru
          _
      $region36: #{prenorm_linear.1} parent=5 // pred_fallthru
        _
      %p369 = scmp.le.s32.totalorder 2, %s13
      // Predicated region
      $region45: #{prenorm_linear.1} parent=5 // pred_check
        %p370 = pneg %p369
      $region46: #{prenorm_linear.1} parent=5 // pred_check_branch
        %372 = sbr.rel (%p370) target = $region48
      $region47: #{prenorm_linear.1} parent=5 // pred_region
        %s373 = ssub.s32 %s13, 2
        // Predicated region
        $region49: #{prenorm_linear.1} parent=47 // pred_check
          %p374 = pneg %p160
        $region50: #{prenorm_linear.1} parent=47 // pred_check_branch
          %376 = sbr.rel (%p374) target = $region52
        $region51: #{prenorm_linear.1} parent=47 // pred_region
          %s377 = sand.u32 %s145, 1
          %s378 = scalar_lea.sflag [#allocation5], %s377
          %s379 = sand.u32 %s145, 1
          %s380 = smul.addr %s379, 8
          %s381 = scalar_lea.vmem [#allocation4], %s380
          %383 = dma.done %s378, 128
        $region52: #{prenorm_linear.1} parent=47 // pred_fallthru
          _
      $region48: #{prenorm_linear.1} parent=5 // pred_fallthru
        _
    $region6: #{prenorm_linear.1} parent=1 // loop_footer
      %s17 = sadd.s32 1, %s13
    $region7: #{prenorm_linear.1} parent=1 // loop_footer_branch
      %12 = sbr.rel target = $region3
    $region8: #{prenorm_linear.1} parent=1 // loop_exit
      _
    %384 = vsyncpa [#allocation5], 1
    %s385 = scalar_lea.sflag [#allocation5], 1
    %386 = vsyncpa %s385, 1

</llo_original>
